<compile_context>
chip_gen: v7x
topology: tpu7x:2x2x1
jax: 0.10.0
libtpu: 0.0.40
codegen_flags: <defaults>
</compile_context>

<pallas_src>
import jax
import jax.numpy as jnp
from jax.experimental import pallas as pl
from jax.experimental.pallas import tpu as pltpu


def _attention_kernel(g_ref, x_ref, w_ref, out_ref):
  """One (batch, spatial-tile) grid step.

  g_ref:   (1, F_g, TS)              spatial on the 128-wide lane axis
  x_ref:   (1, F_x, TS)
  w_ref:   (F_int, F_g + F_x + 3)    packed [W_g^T | W_x^T | b_sum | w_psi | b_psi]
  out_ref: (1, F_x, TS)
  """
  f_g = g_ref.shape[1]
  f_x = x_ref.shape[1]

  g = g_ref[0].astype(jnp.float32)                   # (F_g, TS)
  x = x_ref[0].astype(jnp.float32)                   # (F_x, TS)

  wg = w_ref[:, 0:f_g]                               # (F_int, F_g)
  wx = w_ref[:, f_g:f_g + f_x]                       # (F_int, F_x)
  b_sum = w_ref[:, f_g + f_x:f_g + f_x + 1]          # (F_int, 1)
  wp = w_ref[:, f_g + f_x + 1:f_g + f_x + 2]         # (F_int, 1)
  bp = w_ref[0:1, f_g + f_x + 2:f_g + f_x + 3]       # (1, 1)

  # Channel mix on the MXU (HBM traffic dominates; at realistic UNet widths a
  # VPU MAC loop would be the critical path).
  acc = jnp.dot(wg, g, preferred_element_type=jnp.float32)
  acc = acc + jnp.dot(wx, x, preferred_element_type=jnp.float32)
  psi = jnp.maximum(acc + b_sum, 0.0)                # ReLU, (F_int, TS)

  # Width-1 psi projection: VPU multiply + sublane (XLU) reduce.
  p = jnp.sum(psi * wp, axis=0, keepdims=True) + bp  # (1, TS)
  p = jax.nn.sigmoid(p)

  out_ref[0] = (x * p).astype(out_ref.dtype)         # lane-dense store


def _fold_bn(w, b, gamma, beta, mean, var, eps=1e-5):
  """Fold inference-mode BatchNorm into a 1x1 conv.  w: (Cin, Cout)."""
  scale = gamma / jnp.sqrt(var + eps)                # (Cout,)
  w_f = (w * scale[None, :]).astype(jnp.float32)
  b_f = ((b - mean) * scale + beta).astype(jnp.float32)
  return w_f, b_f


def _pack_operands(params):
  """Fold BN and pack all small operands into one (F_int, F_g+F_x+3) array."""
  wg_f, bg_f = _fold_bn(params["wg"], params["bg"], params["bn_g_gamma"],
                        params["bn_g_beta"], params["bn_g_mean"],
                        params["bn_g_var"])
  wx_f, bx_f = _fold_bn(params["wx"], params["bx"], params["bn_x_gamma"],
                        params["bn_x_beta"], params["bn_x_mean"],
                        params["bn_x_var"])
  wp_f, bp_f = _fold_bn(params["wp"], params["bp"], params["bn_p_gamma"],
                        params["bn_p_beta"], params["bn_p_mean"],
                        params["bn_p_var"])
  f_g, f_int = wg_f.shape
  f_x = wx_f.shape[0]
  packed = jnp.zeros((f_int, f_g + f_x + 3), jnp.float32)
  packed = packed.at[:, 0:f_g].set(wg_f.T)
  packed = packed.at[:, f_g:f_g + f_x].set(wx_f.T)
  packed = packed.at[:, f_g + f_x].set(bg_f + bx_f)       # pre-summed bias
  packed = packed.at[:, f_g + f_x + 1].set(wp_f.reshape(f_int))
  packed = packed.at[0, f_g + f_x + 2].set(bp_f[0])
  return packed


def _round_up(v, m):
  return ((v + m - 1) // m) * m


def _choose_tile(s_len, f_g, f_x, f_int, itemsize, *, vmem_budget_bytes,
                 max_tile, min_grid_steps, batch):
  """Largest multiple-of-128 lane tile fitting the VMEM budget, with enough
  grid steps left over to feed both v7x cores and the DMA pipeline."""
  s_pad128 = _round_up(s_len, 128)
  # Double-buffered I/O blocks (g, x, out in the I/O dtype) + f32 temporaries
  # (f32 copies of g/x, acc/psi, gate, pre-cast output).
  per_lane = (2 * (f_g + 2 * f_x) * itemsize
              + (f_g + 2 * f_x + 2 * f_int + 4) * 4)
  tile_budget = max(128, (vmem_budget_bytes // per_lane) // 128 * 128)
  tile_budget = min(tile_budget, max_tile)
  min_spatial_tiles = max(1, -(-min_grid_steps // max(1, batch)))
  tile_steps = max(128, (s_pad128 // min_spatial_tiles) // 128 * 128)
  return max(128, min(tile_budget, tile_steps, s_pad128))


def attention_block(g, x, params, *,
                    vmem_budget_bytes=20 * 1024 * 1024,
                    max_tile=131072,
                    min_grid_steps=8):
  """g: (N, F_g, D, H, W), x: (N, F_x, D, H, W)  (NCDHW, like PyTorch)."""
  N, F_g, D, H, W = g.shape
  F_x = x.shape[1]
  S = D * H * W

  packed = _pack_operands(params)
  F_int = packed.shape[0]

  # NCDHW -> (N, C, S): pure reshape, no data movement.
  g3 = g.reshape(N, F_g, S)
  x3 = x.reshape(N, F_x, S)

  itemsize = jnp.dtype(x.dtype).itemsize
  tile_s = _choose_tile(S, F_g, F_x, F_int, itemsize,
                        vmem_budget_bytes=vmem_budget_bytes,
                        max_tile=max_tile, min_grid_steps=min_grid_steps,
                        batch=N)
  S_pad = _round_up(S, tile_s)
  if S_pad != S:
    # Zero-pad so every block is full and the store stays unmasked; the gate
    # output on the padding is exactly 0 and is sliced off below.
    g3 = jnp.pad(g3, ((0, 0), (0, 0), (0, S_pad - S)))
    x3 = jnp.pad(x3, ((0, 0), (0, 0), (0, S_pad - S)))

  grid = (N, S_pad // tile_s)
  const = lambda b, s: (0, 0)

  flops = N * S * (2 * (F_g + F_x) * F_int + 3 * F_int + F_x + 4)
  bytes_accessed = N * S * (F_g + 2 * F_x) * itemsize

  out3 = pl.pallas_call(
      _attention_kernel,
      out_shape=jax.ShapeDtypeStruct((N, F_x, S_pad), x.dtype),
      grid_spec=pltpu.PrefetchScalarGridSpec(
          num_scalar_prefetch=0,
          grid=grid,
          in_specs=[
              pl.BlockSpec((1, F_g, tile_s), lambda b, s: (b, 0, s)),
              pl.BlockSpec((1, F_x, tile_s), lambda b, s: (b, 0, s)),
              pl.BlockSpec((F_int, F_g + F_x + 3), const),
          ],
          out_specs=pl.BlockSpec((1, F_x, tile_s), lambda b, s: (b, 0, s)),
      ),
      compiler_params=pltpu.CompilerParams(
          dimension_semantics=("parallel", "parallel"),
          vmem_limit_bytes=40 * 1024 * 1024),
      cost_estimate=pl.CostEstimate(
          flops=int(flops),
          transcendentals=int(N * S),
          bytes_accessed=int(bytes_accessed)),
  )(g3, x3, packed)

  if S_pad != S:
    out3 = out3[:, :, :S]
  return out3.reshape(N, F_x, D, H, W)


def attention_block_ref(g, x, params):
  """Pure-JAX f32 reference (same folded-BN math as the kernel)."""
  N, F_g, D, H, W = g.shape
  F_x = x.shape[1]
  S = D * H * W
  packed = _pack_operands(params)
  wg = packed[:, 0:F_g]
  wx = packed[:, F_g:F_g + F_x]
  b_sum = packed[:, F_g + F_x]
  wp = packed[:, F_g + F_x + 1]
  bp = packed[0, F_g + F_x + 2]

  g3 = g.reshape(N, F_g, S).astype(jnp.float32)
  x3 = x.reshape(N, F_x, S).astype(jnp.float32)
  hi = jax.lax.Precision.HIGHEST
  acc = (jnp.einsum("oc,ncs->nos", wg, g3, precision=hi)
         + jnp.einsum("oc,ncs->nos", wx, x3, precision=hi)
         + b_sum[None, :, None])
  psi = jnp.maximum(acc, 0.0)
  p = jnp.einsum("o,nos->ns", wp, psi, precision=hi)[:, None, :] + bp
  p = jax.nn.sigmoid(p)
  out3 = (x3 * p).astype(x.dtype)
  return out3.reshape(N, F_x, D, H, W)


def make_params(key, F_g, F_x, F_int):
  ks = jax.random.split(key, 6)
  return {
      # Conv weights stored as (Cin, Cout).
      "wg": jax.random.normal(ks[0], (F_g, F_int), jnp.float32) * 0.1,
      "bg": jax.random.normal(ks[1], (F_int,), jnp.float32) * 0.1,
      "wx": jax.random.normal(ks[2], (F_x, F_int), jnp.float32) * 0.1,
      "bx": jax.random.normal(ks[3], (F_int,), jnp.float32) * 0.1,
      "wp": jax.random.normal(ks[4], (F_int, 1), jnp.float32) * 0.1,
      "bp": jax.random.normal(ks[5], (1,), jnp.float32) * 0.1,
      # BatchNorm (inference-mode) params, deterministic.
      "bn_g_gamma": jnp.linspace(0.9, 1.1, F_int, dtype=jnp.float32),
      "bn_g_beta": jnp.linspace(-0.05, 0.05, F_int, dtype=jnp.float32),
      "bn_g_mean": jnp.linspace(-0.1, 0.1, F_int, dtype=jnp.float32),
      "bn_g_var": jnp.linspace(0.8, 1.2, F_int, dtype=jnp.float32),
      "bn_x_gamma": jnp.linspace(1.1, 0.9, F_int, dtype=jnp.float32),
      "bn_x_beta": jnp.linspace(0.05, -0.05, F_int, dtype=jnp.float32),
      "bn_x_mean": jnp.linspace(0.1, -0.1, F_int, dtype=jnp.float32),
      "bn_x_var": jnp.linspace(1.2, 0.8, F_int, dtype=jnp.float32),
      "bn_p_gamma": jnp.array([1.05], jnp.float32),
      "bn_p_beta": jnp.array([0.02], jnp.float32),
      "bn_p_mean": jnp.array([-0.03], jnp.float32),
      "bn_p_var": jnp.array([0.95], jnp.float32),
  }


if __name__ == "__main__":
  key = jax.random.PRNGKey(0)
  k_g, k_x, k_p = jax.random.split(key, 3)

  # att3-like widths from DialResUNet: Attention_block(F_g=32, F_x=16, F_int=16)
  # at a small test volume.
  N, F_g, F_x, F_int = 2, 32, 16, 16
  D, H, W = 4, 16, 16                      # S = 1024: tile-divisible path

  g = jax.random.normal(k_g, (N, F_g, D, H, W), jnp.float32)
  x = jax.random.normal(k_x, (N, F_x, D, H, W), jnp.float32)
  params = make_params(k_p, F_g, F_x, F_int)

  out = jax.block_until_ready(attention_block(g, x, params))
  ref = attention_block_ref(g, x, params)
  assert out.shape == (N, F_x, D, H, W)
  assert jnp.allclose(out, ref, atol=1e-4, rtol=1e-4)

  # Non-divisible volume: exercises the pad-to-tile remainder path.
  D2, H2, W2 = 3, 10, 10                   # S = 300 -> padded to 384
  g2 = jax.random.normal(k_g, (N, F_g, D2, H2, W2), jnp.float32)
  x2 = jax.random.normal(k_x, (N, F_x, D2, H2, W2), jnp.float32)
  out2 = jax.block_until_ready(attention_block(g2, x2, params))
  ref2 = attention_block_ref(g2, x2, params)
  assert out2.shape == (N, F_x, D2, H2, W2)
  assert jnp.allclose(out2, ref2, atol=1e-4, rtol=1e-4)

  print("KERNEL_OK")
</pallas_src>

<mosaic_0001>
module attributes {stable_mosaic.version = 11 : i64} {
  func.func @_attention_kernel(%arg0: i32, %arg1: i32, %arg2: memref<1x32x256xf32, #tpu.memory_space<vmem>>, %arg3: memref<1x16x256xf32, #tpu.memory_space<vmem>>, %arg4: memref<16x51xf32, #tpu.memory_space<vmem>>, %arg5: memref<1x16x256xf32, #tpu.memory_space<vmem>>) attributes {dimension_semantics = [#tpu.dimension_semantics<parallel>, #tpu.dimension_semantics<parallel>], iteration_bounds = array<i64: 2, 4>, scalar_prefetch = 0 : i64, scratch_operands = 0 : i64, tpu.core_type = #tpu.core_type<tc>, window_params = [{transform_indices = @transform_0, window_bounds = array<i64: 1, 32, 256>}, {transform_indices = @transform_1, window_bounds = array<i64: 1, 16, 256>}, {pipeline_mode = #tpu.pipeline_mode<synchronous>, transform_indices = @transform_2, window_bounds = array<i64: 16, 51>}, {transform_indices = @transform_3, window_bounds = array<i64: 1, 16, 256>}]} {
    %c0 = arith.constant 0 : index
    %c0_0 = arith.constant 0 : index
    %c0_1 = arith.constant 0 : index
    %0 = vector.load %arg2[%c0, %c0_0, %c0_1] : memref<1x32x256xf32, #tpu.memory_space<vmem>>, vector<1x32x256xf32>
    %1 = vector.shape_cast %0 : vector<1x32x256xf32> to vector<32x256xf32>
    %c0_2 = arith.constant 0 : index
    %c0_3 = arith.constant 0 : index
    %c0_4 = arith.constant 0 : index
    %2 = vector.load %arg3[%c0_2, %c0_3, %c0_4] : memref<1x16x256xf32, #tpu.memory_space<vmem>>, vector<1x16x256xf32>
    %3 = vector.shape_cast %2 : vector<1x16x256xf32> to vector<16x256xf32>
    %c0_5 = arith.constant 0 : index
    %c0_6 = arith.constant 0 : index
    %4 = vector.load %arg4[%c0_5, %c0_6] : memref<16x51xf32, #tpu.memory_space<vmem>>, vector<16x32xf32>
    %c0_7 = arith.constant 0 : index
    %c32 = arith.constant 32 : index
    %5 = vector.load %arg4[%c0_7, %c32] : memref<16x51xf32, #tpu.memory_space<vmem>>, vector<16x16xf32>
    %c0_8 = arith.constant 0 : index
    %c48 = arith.constant 48 : index
    %6 = vector.load %arg4[%c0_8, %c48] : memref<16x51xf32, #tpu.memory_space<vmem>>, vector<16x1xf32>
    %c0_9 = arith.constant 0 : index
    %c49 = arith.constant 49 : index
    %7 = vector.load %arg4[%c0_9, %c49] : memref<16x51xf32, #tpu.memory_space<vmem>>, vector<16x1xf32>
    %c0_10 = arith.constant 0 : index
    %c50 = arith.constant 50 : index
    %8 = vector.load %arg4[%c0_10, %c50] : memref<16x51xf32, #tpu.memory_space<vmem>>, vector<1x1xf32>
    %cst = arith.constant dense<0.000000e+00> : vector<16x256xf32>
    %9 = tpu.matmul %4, %1, %cst {dimension_numbers = #tpu.dot_dimension_numbers<[1], [0], [0], [1], [0, 0, 1, 1], [], []>} : vector<16x32xf32>, vector<32x256xf32>, vector<16x256xf32> -> vector<16x256xf32>
    %cst_11 = arith.constant dense<0.000000e+00> : vector<16x256xf32>
    %10 = tpu.matmul %5, %3, %cst_11 {dimension_numbers = #tpu.dot_dimension_numbers<[1], [0], [0], [1], [0, 0, 1, 1], [], []>} : vector<16x16xf32>, vector<16x256xf32>, vector<16x256xf32> -> vector<16x256xf32>
    %11 = arith.addf %9, %10 : vector<16x256xf32>
    %12 = vector.broadcast %6 : vector<16x1xf32> to vector<16x256xf32>
    %13 = arith.addf %11, %12 : vector<16x256xf32>
    %cst_12 = arith.constant 0.000000e+00 : f32
    %14 = vector.broadcast %cst_12 : f32 to vector<16x256xf32>
    %15 = arith.maximumf %13, %14 : vector<16x256xf32>
    %16 = vector.broadcast %7 : vector<16x1xf32> to vector<16x256xf32>
    %17 = arith.mulf %15, %16 : vector<16x256xf32>
    %cst_13 = arith.constant dense<0.000000e+00> : vector<256xf32>
    %18 = vector.multi_reduction <add>, %17, %cst_13 [0] : vector<16x256xf32> to vector<256xf32>
    %19 = vector.shape_cast %18 : vector<256xf32> to vector<1x256xf32>
    %20 = vector.broadcast %8 : vector<1x1xf32> to vector<1x256xf32>
    %21 = arith.addf %19, %20 : vector<1x256xf32>
    %22 = arith.negf %21 : vector<1x256xf32>
    %23 = math.exp %22 : vector<1x256xf32>
    %cst_14 = arith.constant 1.000000e+00 : f32
    %24 = vector.broadcast %cst_14 : f32 to vector<1x256xf32>
    %25 = arith.addf %24, %23 : vector<1x256xf32>
    %26 = arith.divf %24, %25 : vector<1x256xf32>
    %27 = vector.broadcast %26 : vector<1x256xf32> to vector<16x256xf32>
    %28 = arith.mulf %3, %27 : vector<16x256xf32>
    %c0_15 = arith.constant 0 : index
    %c0_16 = arith.constant 0 : index
    %c0_17 = arith.constant 0 : index
    %29 = vector.load %arg5[%c0_15, %c0_16, %c0_17] : memref<1x16x256xf32, #tpu.memory_space<vmem>>, vector<1x16x256xf32>
    %30 = vector.shape_cast %29 : vector<1x16x256xf32> to vector<16x256xf32>
    %31 = vector.shape_cast %28 : vector<16x256xf32> to vector<1x16x256xf32>
    tpu.vector_store %arg5[%c0_15, %c0_16, %c0_17], %31 {strides = array<i32>} : memref<1x16x256xf32, #tpu.memory_space<vmem>>, vector<1x16x256xf32>,
    return
  }
  func.func @transform_0(%arg0: i32, %arg1: i32) -> (i32, i32, i32) {
    %c0_i32 = arith.constant 0 : i32
    %c0_i32_0 = arith.constant 0 : i32
    return %arg0, %c0_i32, %arg1 : i32, i32, i32
  }
  func.func @transform_1(%arg0: i32, %arg1: i32) -> (i32, i32, i32) {
    %c0_i32 = arith.constant 0 : i32
    %c0_i32_0 = arith.constant 0 : i32
    return %arg0, %c0_i32, %arg1 : i32, i32, i32
  }
  func.func @transform_2(%arg0: i32, %arg1: i32) -> (i32, i32) {
    %c0_i32 = arith.constant 0 : i32
    %c0_i32_0 = arith.constant 0 : i32
    %c0_i32_1 = arith.constant 0 : i32
    return %c0_i32, %c0_i32_0 : i32, i32
  }
  func.func @transform_3(%arg0: i32, %arg1: i32) -> (i32, i32, i32) {
    %c0_i32 = arith.constant 0 : i32
    %c0_i32_0 = arith.constant 0 : i32
    return %arg0, %c0_i32, %arg1 : i32, i32, i32
  }
}

</mosaic_0001>

<llo_original>
// kernel: tpu_custom_call.1
$region0: #{tpu_custom_call.1}
  #allocation0 [shape = 'u32[]', space=smem, size = 0x4, offset = 0x4, fixed_abs, tag = 'smem constant byte address 0x4 - core index']
  #allocation1 [shape = 'u32[144,128]{1,0:T(1,128)}', space=vmem, size = 0x12000, scoped, tag = 'internal scratch']
  %s0 = inlined_call_operand.hbm [shape: f32[2,32,1024], index: 0, kind: input, shape index: {}]
  %s1 = inlined_call_operand.hbm [shape: f32[2,16,1024], index: 1, kind: input, shape index: {}]
  %s2 = inlined_call_operand.hbm [shape: f32[16,51], index: 2, kind: input, shape index: {}]
  %s3 = inlined_call_operand.hbm [shape: f32[2,16,1024], index: 3, kind: output, shape index: {}]
  %s4 = sld [smem:[#allocation0]]
  $region57: #{tpu_custom_call.1} parent=0
    _
  %s6 = ssub.s32 1, %s4
  %s7 = scalar_select 0, %s6, %s4
  $region1: #{tpu_custom_call.1} parent=0
    #allocation2 [shape = 'u8[65536]{0}', space=vmem, size = 0x10000, scoped, tag = 'input window, operand 0']
    #allocation3 [shape = 's32[2]{0}', space=sflag, size = 0x8, scoped, tag = 'scoped memory for tpu_custom_call.1']
    #allocation4 [shape = 's32[2]{0}', space=sflag, size = 0x8, scoped, tag = 'scoped memory for tpu_custom_call.1']
    #allocation5 [shape = 'u8[32768]{0}', space=vmem, size = 0x8000, scoped, tag = 'input window, operand 1']
    #allocation6 [shape = 's32[2]{0}', space=sflag, size = 0x8, scoped, tag = 'scoped memory for tpu_custom_call.1']
    #allocation7 [shape = 'u8[8192]{0}', space=vmem, size = 0x2000, scoped, tag = 'input window, operand 2, single buffered']
    #allocation8 [shape = 'u8[32768]{0}', space=vmem, size = 0x8000, scoped, tag = 'output window, operand 0']
    %8 = vsyncpa [#allocation3], 0
    %s9 = scalar_lea.sflag [#allocation3], 1
    %10 = vsyncpa %s9, 0
    %11 = vsyncpa [#allocation6], 0
    %s12 = scalar_lea.sflag [#allocation6], 1
    %13 = vsyncpa %s12, 0
    %14 = vsyncpa [#allocation4], 0
    %s15 = scalar_lea.sflag [#allocation4], 1
    %16 = vsyncpa %s15, 0
    loop: start=0, step=1, limit=10
    $region2: #{tpu_custom_call.1} parent=1 // loop_pre_header
      _
    $region3: #{tpu_custom_call.1} parent=1 // loop_header
      %s18 = sphi 0, %s22
      %p19 = scmp.ge.s32.totalorder %s18, 10
      %s25 = sphi 0, %s37
      %s26 = sphi 0, %s33
      %s27 = sphi 0, %s25
      %s28 = sphi 0, %s26
      %s29 = sphi 0, %s27
      %s30 = sphi 0, %s28
      %s42 = sphi 0, %s44
      %s45 = sphi 0, %s42
      %s46 = sphi 0, %s45
      %s62 = sphi 0, %s46
      %s70 = sphi 0, %s72
      %s73 = sphi 0, %s70
      %s74 = sphi 0, %s73
      %s90 = sphi 0, %s74
      %s94 = sphi 0, %s94
      %s96 = sphi 0, %s94
      %s97 = sphi 0, %s96
      %s111 = sphi 0, %s97
      %s119 = sphi 0, %s121
      %s122 = sphi 0, %s119
      %s123 = sphi 0, %s122
      %s139 = sphi 0, %s123
    $region4: #{tpu_custom_call.1} parent=1 // loop_header_branch
      %21 = sbr.rel (%p19) target = $region8
    $region5: #{tpu_custom_call.1} parent=1 // loop_body
      %s23 = ssub.s32 %s18, 1
      %s24 = ssub.s32 %s18, 2
      %s31 = sadd.s32 1, %s26
      %p32 = scmp.ge.s32.totalorder %s31, 4
      %s33 = scalar_select %p32, 0, %s31
      %s34 = sadd.s32 1, %s25
      %s35 = scalar_select %p32, %s34, %s25
      %p36 = scmp.ge.s32.totalorder %s35, 2
      %s37 = scalar_select %p36, 0, %s35
      %s38 = ssub.s32 %s25, %s37
      %s39 = ssub.s32 %s26, %s33
      %s40 = sor.u32 %s38, %s39
      %p41 = scmp.eq.s32.totalorder %s40, 0
      %s43 = sadd.s32 %s42, 1
      %s44 = scalar_select %p41, %s42, %s43
      %p47 = pneg %p41
      %p48 = scmp.eq.s32.totalorder %s18, 7
      %p49 = por %p47, %p48
      %p50 = scmp.ne.s32.totalorder %s42, %s45
      %p51 = scmp.eq.s32.totalorder %s18, 0
      %p52 = por %p50, %p51
      %p53 = scmp.ne.s32.totalorder %s42, %s45
      %p54 = scmp.eq.s32.totalorder %s23, 7
      %p55 = por %p53, %p54
      %p56 = scmp.ne.s32.totalorder %s45, %s46
      %p57 = scmp.eq.s32.totalorder %s23, 0
      %p58 = por %p56, %p57
      %p59 = scmp.ne.s32.totalorder %s45, %s46
      %p60 = scmp.eq.s32.totalorder %s24, 7
      %p61 = por %p59, %p60
      %p63 = scmp.ne.s32.totalorder %s46, %s62
      %p64 = scmp.eq.s32.totalorder %s24, 0
      %p65 = por %p63, %p64
      %s66 = ssub.s32 %s25, %s37
      %s67 = ssub.s32 %s26, %s33
      %s68 = sor.u32 %s66, %s67
      %p69 = scmp.eq.s32.totalorder %s68, 0
      %s71 = sadd.s32 %s70, 1
      %s72 = scalar_select %p69, %s70, %s71
      %p75 = pneg %p69
      %p76 = scmp.eq.s32.totalorder %s18, 7
      %p77 = por %p75, %p76
      %p78 = scmp.ne.s32.totalorder %s70, %s73
      %p79 = scmp.eq.s32.totalorder %s18, 0
      %p80 = por %p78, %p79
      %p81 = scmp.ne.s32.totalorder %s70, %s73
      %p82 = scmp.eq.s32.totalorder %s23, 7
      %p83 = por %p81, %p82
      %p84 = scmp.ne.s32.totalorder %s73, %s74
      %p85 = scmp.eq.s32.totalorder %s23, 0
      %p86 = por %p84, %p85
      %p87 = scmp.ne.s32.totalorder %s73, %s74
      %p88 = scmp.eq.s32.totalorder %s24, 7
      %p89 = por %p87, %p88
      %p91 = scmp.ne.s32.totalorder %s74, %s90
      %p92 = scmp.eq.s32.totalorder %s24, 0
      %p93 = por %p91, %p92
      %s95 = sadd.s32 %s94, 1
      %p98 = scmp.eq.s32.totalorder %s18, 7
      %p99 = scmp.ne.s32.totalorder %s94, %s96
      %p100 = scmp.eq.s32.totalorder %s18, 0
      %p101 = por %p99, %p100
      %p102 = scmp.ne.s32.totalorder %s94, %s96
      %p103 = scmp.eq.s32.totalorder %s23, 7
      %p104 = por %p102, %p103
      %p105 = scmp.ne.s32.totalorder %s96, %s97
      %p106 = scmp.eq.s32.totalorder %s23, 0
      %p107 = por %p105, %p106
      %p108 = scmp.ne.s32.totalorder %s96, %s97
      %p109 = scmp.eq.s32.totalorder %s24, 7
      %p110 = por %p108, %p109
      %p112 = scmp.ne.s32.totalorder %s97, %s111
      %p113 = scmp.eq.s32.totalorder %s24, 0
      %p114 = por %p112, %p113
      %s115 = ssub.s32 %s25, %s37
      %s116 = ssub.s32 %s26, %s33
      %s117 = sor.u32 %s115, %s116
      %p118 = scmp.eq.s32.totalorder %s117, 0
      %s120 = sadd.s32 %s119, 1
      %s121 = scalar_select %p118, %s119, %s120
      %p124 = pneg %p118
      %p125 = scmp.eq.s32.totalorder %s18, 7
      %p126 = por %p124, %p125
      %p127 = scmp.ne.s32.totalorder %s119, %s122
      %p128 = scmp.eq.s32.totalorder %s18, 0
      %p129 = por %p127, %p128
      %p130 = scmp.ne.s32.totalorder %s119, %s122
      %p131 = scmp.eq.s32.totalorder %s23, 7
      %p132 = por %p130, %p131
      %p133 = scmp.ne.s32.totalorder %s122, %s123
      %p134 = scmp.eq.s32.totalorder %s23, 0
      %p135 = por %p133, %p134
      %p136 = scmp.ne.s32.totalorder %s122, %s123
      %p137 = scmp.eq.s32.totalorder %s24, 7
      %p138 = por %p136, %p137
      %p140 = scmp.ne.s32.totalorder %s123, %s139
      %p141 = scmp.eq.s32.totalorder %s24, 0
      %p142 = por %p140, %p141
      %p143 = scmp.le.s32.totalorder 1, %s18
      %p144 = scmp.lt.s32.totalorder %s18, 9
      %p145 = pnand %p143, %p144
      %p146 = pneg %p145
      // Predicated region
      $region9: #{tpu_custom_call.1} parent=5 // pred_check
        _
      $region10: #{tpu_custom_call.1} parent=5 // pred_check_branch
        %148 = sbr.rel (%p145) target = $region12
      $region11: #{tpu_custom_call.1} parent=5 // pred_region
        %s149 = ssub.s32 %s18, 1
        // Predicated region
        $region13: #{tpu_custom_call.1} parent=11 // pred_check
          %p150 = pneg %p107
        $region14: #{tpu_custom_call.1} parent=11 // pred_check_branch
          %152 = sbr.rel (%p150) target = $region16
        $region15: #{tpu_custom_call.1} parent=11 // pred_region
          %s154 = ssub.s32 256, 256
          %155 = vsyncadd [#allocation6], %s154
          %s156 = sshll.u32 [#allocation7], 4
          %s157 = int_to_ptr.vmem [resolvable:$true] %s156
          %162 = dma.hbm_to_vmem [thread:$0]  %s2, 256, %s157, [#allocation6], 128, 128, 8
        $region16: #{tpu_custom_call.1} parent=11 // pred_fallthru
          _
      $region12: #{tpu_custom_call.1} parent=5 // pred_fallthru
        _
      %p163 = scmp.lt.s32.totalorder %s18, 8
      // Predicated region
      $region17: #{tpu_custom_call.1} parent=5 // pred_check
        %p164 = pneg %p163
      $region18: #{tpu_custom_call.1} parent=5 // pred_check_branch
        %166 = sbr.rel (%p164) target = $region20
      $region19: #{tpu_custom_call.1} parent=5 // pred_region
        // Predicated region
        $region21: #{tpu_custom_call.1} parent=19 // pred_check
          %p167 = pneg %p52
        $region22: #{tpu_custom_call.1} parent=19 // pred_check_branch
          %169 = sbr.rel (%p167) target = $region24
        $region23: #{tpu_custom_call.1} parent=19 // pred_region
          %s170 = sand.u32 %s42, 1
          %s171 = scalar_lea.sflag [#allocation3], %s170
          %s172 = sand.u32 %s42, 1
          %s173 = smul.addr %s172, 64
          %s174 = scalar_lea.vmem [#allocation2], %s173
          %s175 = smul.u32 2, %s26
          %s177 = ssub.s32 1024, 1024
          %178 = vsyncadd %s171, %s177
          %s179 = smul.addr %s25, 32
          %s180 = sadd.s32 %s175, %s179
          %s181 = smul.addr %s180, 128
          %s182 = scalar_lea.hbm %s0, %s181
          %s183 = sshll.u32 %s174, 4
          %s184 = int_to_ptr.vmem [resolvable:$true] %s183
          %189 = dma.hbm_to_vmem [thread:$0]  %s182, 1024, %s184, %s171, 1024, 256, 16
        $region24: #{tpu_custom_call.1} parent=19 // pred_fallthru
          _
        // Predicated region
        $region25: #{tpu_custom_call.1} parent=19 // pred_check
          %p190 = pneg %p80
        $region26: #{tpu_custom_call.1} parent=19 // pred_check_branch
          %192 = sbr.rel (%p190) target = $region28
        $region27: #{tpu_custom_call.1} parent=19 // pred_region
          %s193 = sand.u32 %s18, 1
          %s194 = scalar_lea.sflag [#allocation6], %s193
          %s195 = sand.u32 %s70, 1
          %s196 = smul.addr %s195, 32
          %s197 = scalar_lea.vmem [#allocation5], %s196
          %s198 = smul.u32 2, %s26
          %s200 = ssub.s32 512, 512
          %201 = vsyncadd %s194, %s200
          %s202 = smul.addr %s25, 16
          %s203 = sadd.s32 %s198, %s202
          %s204 = smul.addr %s203, 128
          %s205 = scalar_lea.hbm %s1, %s204
          %s206 = sshll.u32 %s197, 4
          %s207 = int_to_ptr.vmem [resolvable:$true] %s206
          %212 = dma.hbm_to_vmem [thread:$0]  %s205, 512, %s207, %s194, 1024, 256, 16
        $region28: #{tpu_custom_call.1} parent=19 // pred_fallthru
          _
      $region20: #{tpu_custom_call.1} parent=5 // pred_fallthru
        _
      %p213 = scmp.le.s32.totalorder 1, %s18
      %p214 = scmp.lt.s32.totalorder %s18, 9
      %p215 = pnand %p213, %p214
      %p216 = pneg %p215
      // Predicated region
      $region29: #{tpu_custom_call.1} parent=5 // pred_check
        _
      $region30: #{tpu_custom_call.1} parent=5 // pred_check_branch
        %218 = sbr.rel (%p215) target = $region32
      $region31: #{tpu_custom_call.1} parent=5 // pred_region
        %s219 = ssub.s32 %s18, 1
        %s220 = sand.u32 %s45, 1
        %s221 = scalar_lea.sflag [#allocation3], %s220
        %s222 = sand.u32 %s45, 1
        %s223 = smul.addr %s222, 64
        %s224 = scalar_lea.vmem [#allocation2], %s223
        // Predicated region
        $region33: #{tpu_custom_call.1} parent=31 // pred_check
          %p225 = pneg %p58
        $region34: #{tpu_custom_call.1} parent=31 // pred_check_branch
          %227 = sbr.rel (%p225) target = $region36
        $region35: #{tpu_custom_call.1} parent=31 // pred_region
          %228 = dma.done %s221, 1024
        $region36: #{tpu_custom_call.1} parent=31 // pred_fallthru
          _
        %s229 = sand.u32 %s23, 1
        %s230 = scalar_lea.sflag [#allocation6], %s229
        %s231 = sand.u32 %s73, 1
        %s232 = smul.addr %s231, 32
        %s233 = scalar_lea.vmem [#allocation5], %s232
        // Predicated region
        $region37: #{tpu_custom_call.1} parent=31 // pred_check
          %p234 = pneg %p86
        $region38: #{tpu_custom_call.1} parent=31 // pred_check_branch
          %236 = sbr.rel (%p234) target = $region40
        $region39: #{tpu_custom_call.1} parent=31 // pred_region
          %237 = dma.done %s230, 512
        $region40: #{tpu_custom_call.1} parent=31 // pred_fallthru
          _
        // Predicated region
        $region41: #{tpu_custom_call.1} parent=31 // pred_check
          %p238 = pneg %p107
        $region42: #{tpu_custom_call.1} parent=31 // pred_check_branch
          %240 = sbr.rel (%p238) target = $region44
        $region43: #{tpu_custom_call.1} parent=31 // pred_region
          %241 = dma.done [#allocation6], 256
        $region44: #{tpu_custom_call.1} parent=31 // pred_fallthru
          _
        %s242 = sand.u32 %s45, 1
        %s243 = scalar_lea.sflag [#allocation3], %s242
        %s244 = sand.u32 %s45, 1
        %s245 = smul.addr %s244, 64
        %s246 = scalar_lea.vmem [#allocation2], %s245
        %p247 = pneg %p58
        %p248 = pneg %p55
        %s249 = sand.u32 %s23, 1
        %s250 = scalar_lea.sflag [#allocation6], %s249
        %s251 = sand.u32 %s73, 1
        %s252 = smul.addr %s251, 32
        %s253 = scalar_lea.vmem [#allocation5], %s252
        %p254 = pneg %p86
        %p255 = pneg %p83
        %p256 = pneg %p107
        %p257 = pneg %p104
        %p258 = pneg %p135
        %p259 = pneg %p132
        %s260 = sand.u32 %s122, 1
        %s261 = scalar_lea.sflag [#allocation4], %s260
        %s262 = sand.u32 %s122, 1
        %s263 = smul.addr %s262, 32
        %s264 = scalar_lea.vmem [#allocation8], %s263
        %s265 = smul.u32 2, %s28
        %s266 = smul.u32 2, %s28
        %s267 = smul.u32 2, %s28
        %v268 = vld [vmem:[%s224] sm:$0xff]
        %v269 = vld [vmem:[%s224 + $0x8] sm:$0xff]
        %v270 = vld [vmem:[%s224 + $0x10] sm:$0xff]
        %v271 = vld [vmem:[%s224 + $0x18] sm:$0xff]
        %v272 = vld [vmem:[%s224 + $0x20] sm:$0xff]
        %v273 = vld [vmem:[%s224 + $0x28] sm:$0xff]
        %v274 = vld [vmem:[%s224 + $0x30] sm:$0xff]
        %v275 = vld [vmem:[%s224 + $0x38] sm:$0xff]
        %v276 = vld [vmem:[%s233] sm:$0xff]
        %v277 = vld [vmem:[%s233 + $0x8] sm:$0xff]
        %v278 = vld [vmem:[%s233 + $0x10] sm:$0xff]
        %v279 = vld [vmem:[%s233 + $0x18] sm:$0xff]
        %v280 = vld [vmem:[#allocation7] sm:$0xff]
        %v281 = vld [vmem:[#allocation7 + $0x8] sm:$0xff]
        %v282 = vld [vmem:[#allocation7] sm:$0x1]
        %285 = vrot.lane.b32.xlu0 %v280, 96
        %v286 = vpop.permute.xlu0 %285
        %287 = vrot.lane.b32.xlu0 %v281, 96
        %v288 = vpop.permute.xlu0 %287
        %vm289 = vcmask 130048
        %v290 = vsel %vm289, %v286, 0
        %v292 = vsel %vm289, %v288, 0
        %294 = vmatprep.subr.mxu0 %v277
        %295 = vmatpush1.msra.mxu0 %v276
        %296 = vmatprep.subr.mxu0 %v279
        %297 = vmatpush1.msra.mxu0 %v278
        %298 = vmatprep.subr.mxu0 0.0
        %299 = vmatpush1.msra.mxu0 0.0
        %300 = vmatprep.subr.mxu0 0.0
        %301 = vmatpush1.msra.mxu0 0.0
        %302 = vmatprep.subr.mxu0 0.0
        %303 = vmatpush1.msra.mxu0 0.0
        %304 = vmatprep.subr.mxu0 0.0
        %305 = vmatpush1.msra.mxu0 0.0
        %306 = vmatprep.subr.mxu0 0.0
        %307 = vmatpush1.msra.mxu0 0.0
        %308 = vmatprep.subr.mxu0 0.0
        %309 = vmatpush1.msra.mxu0 0.0
        %310 = vmatprep.subr.mxu0 0.0
        %311 = vmatpush1.msra.mxu0 0.0
        %312 = vmatprep.subr.mxu0 0.0
        %313 = vmatpush1.msra.mxu0 0.0
        %314 = vmatprep.subr.mxu0 0.0
        %315 = vmatpush1.msra.mxu0 0.0
        %316 = vmatprep.subr.mxu0 0.0
        %317 = vmatpush1.msra.mxu0 0.0
        %318 = vmatprep.subr.mxu0 0.0
        %319 = vmatpush1.msra.mxu0 0.0
        %320 = vmatprep.subr.mxu0 0.0
        %321 = vmatpush1.msra.mxu0 0.0
        %322 = vmatprep.subr.mxu0 0.0
        %323 = vmatpush1.msra.mxu0 0.0
        %324 = vmatprep.subr.mxu0 0.0
        %325 = vmatpush1.msra.mxu0 0.0
        %326 = vmatprep.subr.mxu0 0.0
        %327 = vmatpush1.msra.mxu0 0.0
        %328 = vmatprep.subr.mxu0 0.0
        %329 = vmatpush1.msra.mxu0 0.0
        %330 = vmatprep.subr.mxu0 0.0
        %331 = vmatpush1.msra.mxu0 0.0
        %332 = vmatprep.subr.mxu0 0.0
        %333 = vmatpush1.msra.mxu0 0.0
        %334 = vmatprep.subr.mxu0 0.0
        %335 = vmatpush1.msra.mxu0 0.0
        %336 = vmatprep.subr.mxu0 0.0
        %337 = vmatpush1.msra.mxu0 0.0
        %338 = vmatprep.subr.mxu0 0.0
        %339 = vmatpush1.msra.mxu0 0.0
        %340 = vmatprep.subr.mxu0 0.0
        %341 = vmatpush1.msra.mxu0 0.0
        %342 = vmatprep.subr.mxu0 0.0
        %343 = vmatpush1.msra.mxu0 0.0
        %344 = vmatprep.subr.mxu0 0.0
        %345 = vmatpush1.msra.mxu0 0.0
        %346 = vmatprep.subr.mxu0 0.0
        %347 = vmatpush1.msra.mxu0 0.0
        %348 = vmatprep.subr.mxu0 0.0
        %349 = vmatpush1.msra.mxu0 0.0
        %350 = vmatprep.subr.mxu0 0.0
        %351 = vmatpush1.msra.mxu0 0.0
        %352 = vmatprep.subr.mxu0 0.0
        %353 = vmatpush1.msra.mxu0 0.0
        %354 = vmatprep.subr.mxu0 0.0
        %355 = vmatpush1.msra.mxu0 0.0
        %356 = vmatprep.subr.mxu0 0.0
        %357 = vmatpush1.msra.mxu0 0.0
        %358 = vmatprep.mubr.f32.mxu0 0.0
        %359 = vmatmul.mubr.f32.gmra.mrb[0].mxu0 %v290
        %v360 = vpop.f32.mrb[0].mxu0
        %v361 = vadd.f32 0.0, %v360
        %v362 = vpop.f32.mrb[0].mxu0
        %v363 = vadd.f32 0.0, %v362
        %364 = vmatprep.mubr.f32.mxu0 0.0
        %365 = vmatmul.mubr.f32.gmra.mrb[0].mxu0 %v292
        %v366 = vpop.f32.mrb[0].mxu0
        %v367 = vadd.f32 0.0, %v366
        %v368 = vpop.f32.mrb[0].mxu0
        %v369 = vadd.f32 0.0, %v368
        %370 = vdwg.mxu0
        %vm371 = vcmask 261120
        %v372 = vsel %vm371, %v280, 0
        %v374 = vsel %vm371, %v281, 0
        %376 = vmatprep.subr.mxu0 %v269
        %377 = vmatpush1.msra.mxu0 %v268
        %378 = vmatprep.subr.mxu0 %v271
        %379 = vmatpush1.msra.mxu0 %v270
        %380 = vmatprep.subr.mxu0 %v273
        %381 = vmatpush1.msra.mxu0 %v272
        %382 = vmatprep.subr.mxu0 %v275
        %383 = vmatpush1.msra.mxu0 %v274
        %384 = vmatprep.subr.mxu0 0.0
        %385 = vmatpush1.msra.mxu0 0.0
        %386 = vmatprep.subr.mxu0 0.0
        %387 = vmatpush1.msra.mxu0 0.0
        %388 = vmatprep.subr.mxu0 0.0
        %389 = vmatpush1.msra.mxu0 0.0
        %390 = vmatprep.subr.mxu0 0.0
        %391 = vmatpush1.msra.mxu0 0.0
        %392 = vmatprep.subr.mxu0 0.0
        %393 = vmatpush1.msra.mxu0 0.0
        %394 = vmatprep.subr.mxu0 0.0
        %395 = vmatpush1.msra.mxu0 0.0
        %396 = vmatprep.subr.mxu0 0.0
        %397 = vmatpush1.msra.mxu0 0.0
        %398 = vmatprep.subr.mxu0 0.0
        %399 = vmatpush1.msra.mxu0 0.0
        %400 = vmatprep.subr.mxu0 0.0
        %401 = vmatpush1.msra.mxu0 0.0
        %402 = vmatprep.subr.mxu0 0.0
        %403 = vmatpush1.msra.mxu0 0.0
        %404 = vmatprep.subr.mxu0 0.0
        %405 = vmatpush1.msra.mxu0 0.0
        %406 = vmatprep.subr.mxu0 0.0
        %407 = vmatpush1.msra.mxu0 0.0
        %408 = vmatprep.subr.mxu0 0.0
        %409 = vmatpush1.msra.mxu0 0.0
        %410 = vmatprep.subr.mxu0 0.0
        %411 = vmatpush1.msra.mxu0 0.0
        %412 = vmatprep.subr.mxu0 0.0
        %413 = vmatpush1.msra.mxu0 0.0
        %414 = vmatprep.subr.mxu0 0.0
        %415 = vmatpush1.msra.mxu0 0.0
        %416 = vmatprep.subr.mxu0 0.0
        %417 = vmatpush1.msra.mxu0 0.0
        %418 = vmatprep.subr.mxu0 0.0
        %419 = vmatpush1.msra.mxu0 0.0
        %420 = vmatprep.subr.mxu0 0.0
        %421 = vmatpush1.msra.mxu0 0.0
        %422 = vmatprep.subr.mxu0 0.0
        %423 = vmatpush1.msra.mxu0 0.0
        %424 = vmatprep.subr.mxu0 0.0
        %425 = vmatpush1.msra.mxu0 0.0
        %426 = vmatprep.subr.mxu0 0.0
        %427 = vmatpush1.msra.mxu0 0.0
        %428 = vmatprep.subr.mxu0 0.0
        %429 = vmatpush1.msra.mxu0 0.0
        %430 = vmatprep.subr.mxu0 0.0
        %431 = vmatpush1.msra.mxu0 0.0
        %432 = vmatprep.subr.mxu0 0.0
        %433 = vmatpush1.msra.mxu0 0.0
        %434 = vmatprep.subr.mxu0 0.0
        %435 = vmatpush1.msra.mxu0 0.0
        %436 = vmatprep.subr.mxu0 0.0
        %437 = vmatpush1.msra.mxu0 0.0
        %438 = vmatprep.subr.mxu0 0.0
        %439 = vmatpush1.msra.mxu0 0.0
        %440 = vmatprep.mubr.f32.mxu0 0.0
        %441 = vmatmul.mubr.f32.gmra.mrb[0].mxu0 %v372
        %v442 = vpop.f32.mrb[0].mxu0
        %v443 = vadd.f32 %v361, %v442
        %v444 = vpop.f32.mrb[0].mxu0
        %v445 = vadd.f32 %v363, %v444
        %446 = vmatprep.mubr.f32.mxu0 0.0
        %447 = vmatmul.mubr.f32.gmra.mrb[0].mxu0 %v374
        %v448 = vpop.f32.mrb[0].mxu0
        %v449 = vadd.f32 %v367, %v448
        %v450 = vpop.f32.mrb[0].mxu0
        %v451 = vadd.f32 %v369, %v450
        %452 = vdwg.mxu0
        %453 = vset.pattern.permute.xlu0 48
        %454 = vperm.xlu0 %453, %v280
        %v455 = vpop.permute.xlu0 %454
        %457 = vset.pattern.permute.xlu0 48
        %458 = vperm.xlu0 %457, %v281
        %v459 = vpop.permute.xlu0 %458
        %v461 = vadd.f32 %v443, %v455
        %v462 = vadd.f32 %v445, %v455
        %v463 = vadd.f32 %v449, %v459
        %v464 = vadd.f32 %v451, %v459
        %v465 = vmax.f32 %v461, 0.0
        %v466 = vmax.f32 %v462, 0.0
        %v467 = vmax.f32 %v463, 0.0
        %v468 = vmax.f32 %v464, 0.0
        %469 = vset.pattern.permute.xlu0 49
        %470 = vperm.xlu0 %469, %v280
        %v471 = vpop.permute.xlu0 %470
        %473 = vset.pattern.permute.xlu0 49
        %474 = vperm.xlu0 %473, %v281
        %v475 = vpop.permute.xlu0 %474
        %v477 = vmul.f32 %v465, %v471
        %v478 = vmul.f32 %v466, %v471
        %v479 = vmul.f32 %v467, %v475
        %v480 = vmul.f32 %v468, %v475
        %v481 = vadd.f32 %v477, %v479
        %v482 = vrot.slane %v481, 4
        %v483 = vadd.f32 %v481, %v482
        %v484 = vrot.slane %v483, 2
        %v485 = vadd.f32 %v483, %v484
        %v486 = vrot.slane %v485, 1
        %v487 = vadd.f32 %v485, %v486
        %v488 = vadd.f32 %v478, %v480
        %v489 = vrot.slane %v488, 4
        %v490 = vadd.f32 %v488, %v489
        %v491 = vrot.slane %v490, 2
        %v492 = vadd.f32 %v490, %v491
        %v493 = vrot.slane %v492, 1
        %v494 = vadd.f32 %v492, %v493
        %496 = vset.pattern.permute.xlu0 50
        %497 = vperm.xlu0 %496, %v282
        %v498 = vpop.permute.xlu0 %497
        %v500 = vadd.f32 %v487, %v498
        %v501 = vadd.f32 %v494, %v498
        %v502 = vxor.u32 %v500, 2147483648
        %v503 = vxor.u32 %v501, 2147483648
        %v504 = vmul.f32 %v502, 1.442695
        %v505 = vpow.pop %v504
        %v506 = vmul.f32 %v503, 1.442695
        %v507 = vpow.pop %v506
        %v508 = vadd.f32 %v505, 1.0
        %v509 = vadd.f32 %v507, 1.0
        %v510 = vrcp.pop %v508
        %v511 = vmul.f32 1.0, %v510
        %v512 = vrcp.pop %v509
        %v513 = vmul.f32 1.0, %v512
        %v514 = vlaneseq
        %v515 = vshrl.u32 %v514, 7
        %v516 = vsub.s32 0, %v515
        %v517 = vrot.slane %v511, %v516
        %v518 = vlaneseq
        %v519 = vshrl.u32 %v518, 7
        %v520 = vsub.s32 0, %v519
        %v521 = vrot.slane %v513, %v520
        %v522 = vmul.f32 %v276, %v517
        %v523 = vmul.f32 %v277, %v521
        %v524 = vmul.f32 %v278, %v517
        %v525 = vmul.f32 %v279, %v521
        %526 = vst [vmem:[%s264] sm:$0xff] %v522
        %527 = vst [vmem:[%s264 + $0x8] sm:$0xff] %v523
        %528 = vst [vmem:[%s264 + $0x10] sm:$0xff] %v524
        %529 = vst [vmem:[%s264 + $0x18] sm:$0xff] %v525
        %s530 = sand.u32 %s122, 1
        %s531 = scalar_lea.sflag [#allocation4], %s530
        %s532 = sand.u32 %s122, 1
        %s533 = smul.addr %s532, 32
        %s534 = scalar_lea.vmem [#allocation8], %s533
        // Predicated region
        $region45: #{tpu_custom_call.1} parent=31 // pred_check
          %p535 = pneg %p132
        $region46: #{tpu_custom_call.1} parent=31 // pred_check_branch
          %537 = sbr.rel (%p535) target = $region48
        $region47: #{tpu_custom_call.1} parent=31 // pred_region
          %s538 = smul.u32 2, %s28
          %s540 = ssub.s32 512, 512
          %541 = vsyncadd %s531, %s540
          %s542 = smul.addr %s27, 16
          %s543 = sadd.s32 %s538, %s542
          %s544 = smul.addr %s543, 128
          %s545 = scalar_lea.hbm %s3, %s544
          %s546 = sshll.u32 %s534, 4
          %s547 = int_to_ptr.vmem [resolvable:$true] %s546
          %552 = dma.vmem_to_hbm [thread:$0]  %s547, 512, %s545, %s531, 256, 1024, 16
        $region48: #{tpu_custom_call.1} parent=31 // pred_fallthru
          _
      $region32: #{tpu_custom_call.1} parent=5 // pred_fallthru
        _
      %p553 = scmp.le.s32.totalorder 2, %s18
      // Predicated region
      $region49: #{tpu_custom_call.1} parent=5 // pred_check
        %p554 = pneg %p553
      $region50: #{tpu_custom_call.1} parent=5 // pred_check_branch
        %556 = sbr.rel (%p554) target = $region52
      $region51: #{tpu_custom_call.1} parent=5 // pred_region
        %s557 = ssub.s32 %s18, 2
        // Predicated region
        $region53: #{tpu_custom_call.1} parent=51 // pred_check
          %p558 = pneg %p138
        $region54: #{tpu_custom_call.1} parent=51 // pred_check_branch
          %560 = sbr.rel (%p558) target = $region56
        $region55: #{tpu_custom_call.1} parent=51 // pred_region
          %s561 = sand.u32 %s123, 1
          %s562 = scalar_lea.sflag [#allocation4], %s561
          %s563 = sand.u32 %s123, 1
          %s564 = smul.addr %s563, 32
          %s565 = scalar_lea.vmem [#allocation8], %s564
          %566 = dma.done %s562, 512
        $region56: #{tpu_custom_call.1} parent=51 // pred_fallthru
          _
      $region52: #{tpu_custom_call.1} parent=5 // pred_fallthru
        _
    $region6: #{tpu_custom_call.1} parent=1 // loop_footer
      %s22 = sadd.s32 1, %s18
    $region7: #{tpu_custom_call.1} parent=1 // loop_footer_branch
      %17 = sbr.rel target = $region3
    $region8: #{tpu_custom_call.1} parent=1 // loop_exit
      _
    %567 = vsyncpa [#allocation3], 1
    %s568 = scalar_lea.sflag [#allocation3], 1
    %569 = vsyncpa %s568, 1
    %570 = vsyncpa [#allocation6], 1
    %s571 = scalar_lea.sflag [#allocation6], 1
    %572 = vsyncpa %s571, 1
    %573 = vsyncpa [#allocation4], 1
    %s574 = scalar_lea.sflag [#allocation4], 1
    %575 = vsyncpa %s574, 1

</llo_original>
